<compile_context>
chip_gen: v6e
topology: v6e:2x2x1
jax: 0.10.0
libtpu: 0.0.40
codegen_flags: <defaults>
</compile_context>

<pallas_src>
import functools

import jax
import jax.numpy as jnp
from jax.experimental import pallas as pl
from jax.experimental.pallas import tpu as pltpu


def _ce_label_smooth_kernel(x_ref, t_ref, out_ref, acc_ref, *,
                            n_rows, num_classes, epsilon, tiles_per_group):
    """One grid step: reduce a (tile_b, C) logits tile into per-class partial sums."""
    g = pl.program_id(0)                      # row-group axis ("parallel")
    i = pl.program_id(1)                      # reduction axis ("arbitrary")
    tile_b = x_ref.shape[0]

    @pl.when(i == 0)
    def _():
        acc_ref[...] = jnp.zeros_like(acc_ref)

    # Global (unclamped) row offset of this tile; used for tail / duplicate masking.
    row_start = (g * tiles_per_group + i) * tile_b
    local_rows = jax.lax.broadcasted_iota(jnp.int32, (tile_b, 1), 0)
    valid = (row_start + local_rows) < n_rows                     # (tile_b, 1)

    x = x_ref[...].astype(jnp.float32)                            # (tile_b, C)
    x = jnp.where(valid, x, 0.0)                                  # keep masked rows finite

    # Numerically stable log-softmax over classes.
    m = jnp.max(x, axis=1, keepdims=True)
    shifted = x - m
    lse = jnp.log(jnp.sum(jnp.exp(shifted), axis=1, keepdims=True))
    log_probs = shifted - lse                                     # (tile_b, C)

    # Smoothed one-hot targets built in-register (no scatter needed).
    labels = t_ref[...]                                           # (tile_b, 1) int32
    cls = jax.lax.broadcasted_iota(jnp.int32, (tile_b, num_classes), 1)
    one_hot = (cls == labels).astype(jnp.float32)
    smooth = (1.0 - epsilon) * one_hot + (epsilon / num_classes)

    contrib = jnp.where(valid, -smooth * log_probs, 0.0)          # (tile_b, C)
    acc_ref[...] += jnp.sum(contrib, axis=0, keepdims=True)       # per-class partials (1, C)

    @pl.when(i == pl.num_programs(1) - 1)
    def _():
        group_sum = jnp.sum(acc_ref[...])
        out_ref[...] = jnp.full(out_ref.shape, group_sum, dtype=out_ref.dtype)


def _choose_tile_b(b, c, *, target_tile_bytes=4 * 1024 * 1024):
    """Pick a big, sublane-aligned row tile (~4 MiB of logits, capped at 1024 rows)."""
    rows = max(8, target_tile_bytes // (c * 4))
    rows = min(rows, 1024)
    if rows >= b:
        return b                              # single full-extent tile (also covers b < 8)
    return max(8, (rows // 8) * 8)


def cross_entropy_label_smooth(inputs, targets, *, epsilon=0.1, num_classes=None,
                               tile_b=None, num_groups=2,
                               vmem_limit_bytes=32 * 1024 * 1024):
    """inputs: (B, C) float logits, targets: (B,) int labels -> scalar f32 loss."""
    b, c = inputs.shape
    if num_classes is None:
        num_classes = c
    targets2d = targets.reshape(b, 1).astype(jnp.int32)

    if tile_b is None:
        tile_b = _choose_tile_b(b, c)
    tile_b = min(tile_b, b)
    if tile_b < b:
        # Sublane-aligned tiles; for bf16 inputs prefer a multiple of 16 (packed sublanes).
        tile_b = max(8, (tile_b // 8) * 8)

    tiles_total = pl.cdiv(b, tile_b)
    num_groups = max(1, min(num_groups, tiles_total))
    tiles_per_group = pl.cdiv(tiles_total, num_groups)
    max_block = tiles_total - 1

    def row_block(g, i):
        # Clamp so padded group slots re-read the last tile (contributions are masked out).
        return (jnp.minimum(g * tiles_per_group + i, max_block), 0)

    kernel = functools.partial(
        _ce_label_smooth_kernel,
        n_rows=b, num_classes=num_classes, epsilon=float(epsilon),
        tiles_per_group=tiles_per_group,
    )

    out = pl.pallas_call(
        kernel,
        out_shape=jax.ShapeDtypeStruct((1, num_groups * 128), jnp.float32),
        grid_spec=pltpu.PrefetchScalarGridSpec(
            num_scalar_prefetch=0,
            grid=(num_groups, tiles_per_group),
            in_specs=[
                pl.BlockSpec((tile_b, c), row_block),   # logits row tiles
                pl.BlockSpec((tile_b, 1), row_block),   # matching label rows
            ],
            out_specs=pl.BlockSpec((1, 128), lambda g, i: (0, g)),
            scratch_shapes=[pltpu.VMEM((1, c), jnp.float32)],   # per-class accumulator
        ),
        compiler_params=pltpu.CompilerParams(
            dimension_semantics=("parallel", "arbitrary"),
            vmem_limit_bytes=vmem_limit_bytes,
        ),
        cost_estimate=pl.CostEstimate(
            flops=8 * b * c,
            transcendentals=b * c + b,
            bytes_accessed=b * c * inputs.dtype.itemsize + b * 4 + num_groups * 128 * 4,
        ),
    )(inputs, targets2d)

    partials = out.reshape(num_groups, 128)[:, 0]
    return jnp.sum(partials) / b


if __name__ == "__main__":
    key = jax.random.PRNGKey(0)
    k1, k2, k3 = jax.random.split(key, 3)

    num_classes = 32
    epsilon = 0.1

    def reference(x, y):
        logp = jax.nn.log_softmax(x.astype(jnp.float32), axis=1)
        one_hot = jax.nn.one_hot(y, num_classes, dtype=jnp.float32)
        smooth = (1.0 - epsilon) * one_hot + epsilon / num_classes
        return jnp.sum(jnp.mean(-smooth * logp, axis=0))

    # Case 1: small batch, single full-extent tile.
    x1 = jax.random.normal(k1, (16, num_classes), dtype=jnp.float32)
    y1 = jax.random.randint(k2, (16,), 0, num_classes, dtype=jnp.int32)
    loss1 = cross_entropy_label_smooth(x1, y1, epsilon=epsilon)
    jax.block_until_ready(loss1)
    assert jnp.allclose(loss1, reference(x1, y1), rtol=1e-5, atol=1e-5), (loss1, reference(x1, y1))

    # Case 2: batch not divisible by the tile -> exercises tail masking + 2-group split.
    x2 = jax.random.normal(k3, (20, num_classes), dtype=jnp.float32)
    y2 = jax.random.randint(k2, (20,), 0, num_classes, dtype=jnp.int32)
    loss2 = cross_entropy_label_smooth(x2, y2, epsilon=epsilon, tile_b=8)
    jax.block_until_ready(loss2)
    assert jnp.allclose(loss2, reference(x2, y2), rtol=1e-5, atol=1e-5), (loss2, reference(x2, y2))

    # Case 3: bf16 logits (halved HBM traffic); accumulation stays in f32 inside the kernel.
    x3 = x1.astype(jnp.bfloat16)
    loss3 = cross_entropy_label_smooth(x3, y1, epsilon=epsilon)
    jax.block_until_ready(loss3)
    assert jnp.allclose(loss3, reference(x3, y1), rtol=1e-5, atol=1e-5), (loss3, reference(x3, y1))

    print("KERNEL_OK")
</pallas_src>

<mosaic_0001>
module attributes {stable_mosaic.version = 11 : i64} {
  func.func @_ce_label_smooth_kernel(%arg0: i32, %arg1: i32, %arg2: memref<16x32xf32, #tpu.memory_space<vmem>>, %arg3: memref<16x1xi32, #tpu.memory_space<vmem>>, %arg4: memref<1x128xf32, #tpu.memory_space<vmem>>, %arg5: memref<1x32xf32, #tpu.memory_space<vmem>>) attributes {dimension_semantics = [#tpu.dimension_semantics<parallel>, #tpu.dimension_semantics<arbitrary>], iteration_bounds = array<i64: 1, 1>, scalar_prefetch = 0 : i64, scratch_operands = 1 : i64, tpu.core_type = #tpu.core_type<tc>, window_params = [{transform_indices = @transform_0, window_bounds = array<i64: 16, 32>}, {transform_indices = @transform_1, window_bounds = array<i64: 16, 1>}, {transform_indices = @transform_2, window_bounds = array<i64: 1, 128>}]} {
    %c0_i32 = arith.constant 0 : i32
    %0 = arith.cmpi eq, %arg1, %c0_i32 : i32
    %1 = arith.extui %0 : i1 to i32
    %c0_i32_0 = arith.constant 0 : i32
    %2 = arith.cmpi ne, %1, %c0_i32_0 : i32
    scf.if %2 {
      %cst_18 = arith.constant 0.000000e+00 : f32
      %51 = vector.broadcast %cst_18 : f32 to vector<1x32xf32>
      %c0_19 = arith.constant 0 : index
      %c0_20 = arith.constant 0 : index
      %52 = vector.load %arg5[%c0_19, %c0_20] : memref<1x32xf32, #tpu.memory_space<vmem>>, vector<1x32xf32>
      tpu.vector_store %arg5[%c0_19, %c0_20], %51 {strides = array<i32>} : memref<1x32xf32, #tpu.memory_space<vmem>>, vector<1x32xf32>,
    } else {
    }
    %c1_i32 = arith.constant 1 : i32
    %3 = arith.muli %arg0, %c1_i32 : i32
    %4 = arith.addi %3, %arg1 : i32
    %c16_i32 = arith.constant 16 : i32
    %5 = arith.muli %4, %c16_i32 : i32
    %6 = tpu.iota {dimensions = array<i32: 0>} : vector<16x1xi32>
    %7 = vector.broadcast %5 : i32 to vector<16x1xi32>
    %8 = arith.addi %7, %6 : vector<16x1xi32>
    %c16_i32_1 = arith.constant 16 : i32
    %9 = vector.broadcast %c16_i32_1 : i32 to vector<16x1xi32>
    %10 = arith.cmpi slt, %8, %9 : vector<16x1xi32>
    %c0 = arith.constant 0 : index
    %c0_2 = arith.constant 0 : index
    %11 = vector.load %arg2[%c0, %c0_2] : memref<16x32xf32, #tpu.memory_space<vmem>>, vector<16x32xf32>
    %cst = arith.constant 0.000000e+00 : f32
    %12 = vector.shape_cast %10 : vector<16x1xi1> to vector<16x1xi1>
    %13 = vector.broadcast %12 : vector<16x1xi1> to vector<16x32xi1>
    %14 = vector.broadcast %cst : f32 to vector<16x32xf32>
    %15 = arith.select %13, %11, %14 : vector<16x32xi1>, vector<16x32xf32>
    %cst_3 = arith.constant dense<0xFF800000> : vector<16xf32>
    %16 = vector.multi_reduction <maximumf>, %15, %cst_3 [1] : vector<16x32xf32> to vector<16xf32>
    %17 = vector.shape_cast %16 : vector<16xf32> to vector<16x1xf32>
    %18 = vector.broadcast %17 : vector<16x1xf32> to vector<16x32xf32>
    %19 = arith.subf %15, %18 : vector<16x32xf32>
    %20 = math.exp %19 : vector<16x32xf32>
    %cst_4 = arith.constant dense<0.000000e+00> : vector<16xf32>
    %21 = vector.multi_reduction <add>, %20, %cst_4 [1] : vector<16x32xf32> to vector<16xf32>
    %22 = vector.shape_cast %21 : vector<16xf32> to vector<16x1xf32>
    %23 = math.log %22 : vector<16x1xf32>
    %24 = vector.broadcast %23 : vector<16x1xf32> to vector<16x32xf32>
    %25 = arith.subf %19, %24 : vector<16x32xf32>
    %c0_5 = arith.constant 0 : index
    %c0_6 = arith.constant 0 : index
    %26 = vector.load %arg3[%c0_5, %c0_6] : memref<16x1xi32, #tpu.memory_space<vmem>>, vector<16x1xi32>
    %27 = tpu.iota {dimensions = array<i32: 1>} : vector<16x32xi32>
    %28 = vector.broadcast %26 : vector<16x1xi32> to vector<16x32xi32>
    %29 = arith.cmpi eq, %27, %28 : vector<16x32xi32>
    %30 = arith.extui %29 : vector<16x32xi1> to vector<16x32xi32>
    %31 = arith.sitofp %30 : vector<16x32xi32> to vector<16x32xf32>
    %cst_7 = arith.constant 0.899999976 : f32
    %32 = vector.broadcast %cst_7 : f32 to vector<16x32xf32>
    %33 = arith.mulf %32, %31 : vector<16x32xf32>
    %cst_8 = arith.constant 3.125000e-03 : f32
    %34 = vector.broadcast %cst_8 : f32 to vector<16x32xf32>
    %35 = arith.addf %33, %34 : vector<16x32xf32>
    %cst_9 = arith.constant 0.000000e+00 : f32
    %36 = vector.broadcast %cst_9 : f32 to vector<16x32xf32>
    %37 = arith.subf %36, %35 : vector<16x32xf32>
    %38 = arith.mulf %37, %25 : vector<16x32xf32>
    %cst_10 = arith.constant 0.000000e+00 : f32
    %39 = vector.shape_cast %10 : vector<16x1xi1> to vector<16x1xi1>
    %40 = vector.broadcast %39 : vector<16x1xi1> to vector<16x32xi1>
    %41 = vector.broadcast %cst_10 : f32 to vector<16x32xf32>
    %42 = arith.select %40, %38, %41 : vector<16x32xi1>, vector<16x32xf32>
    %c0_11 = arith.constant 0 : index
    %c0_12 = arith.constant 0 : index
    %43 = vector.load %arg5[%c0_11, %c0_12] : memref<1x32xf32, #tpu.memory_space<vmem>>, vector<1x32xf32>
    %cst_13 = arith.constant dense<0.000000e+00> : vector<32xf32>
    %44 = vector.multi_reduction <add>, %42, %cst_13 [0] : vector<16x32xf32> to vector<32xf32>
    %45 = vector.shape_cast %44 : vector<32xf32> to vector<1x32xf32>
    %46 = arith.addf %43, %45 : vector<1x32xf32>
    %c0_14 = arith.constant 0 : index
    %c0_15 = arith.constant 0 : index
    %47 = vector.load %arg5[%c0_14, %c0_15] : memref<1x32xf32, #tpu.memory_space<vmem>>, vector<1x32xf32>
    tpu.vector_store %arg5[%c0_14, %c0_15], %46 {strides = array<i32>} : memref<1x32xf32, #tpu.memory_space<vmem>>, vector<1x32xf32>,
    %c0_i32_16 = arith.constant 0 : i32
    %48 = arith.cmpi eq, %arg1, %c0_i32_16 : i32
    %49 = arith.extui %48 : i1 to i32
    %c0_i32_17 = arith.constant 0 : i32
    %50 = arith.cmpi ne, %49, %c0_i32_17 : i32
    scf.if %50 {
      %c0_18 = arith.constant 0 : index
      %c0_19 = arith.constant 0 : index
      %51 = vector.load %arg5[%c0_18, %c0_19] : memref<1x32xf32, #tpu.memory_space<vmem>>, vector<1x32xf32>
      %52 = vector.shape_cast %51 : vector<1x32xf32> to vector<1x1x32xf32>
      %cst_20 = arith.constant dense<0.000000e+00> : vector<1xf32>
      %53 = vector.multi_reduction <add>, %52, %cst_20 [1, 2] : vector<1x1x32xf32> to vector<1xf32>
      %54 = vector.shape_cast %53 : vector<1xf32> to vector<1x1x1xf32>
      %55 = vector.extract %54[0, 0, 0] : f32 from vector<1x1x1xf32>
      %56 = vector.broadcast %55 : f32 to vector<1x128xf32>
      %c0_21 = arith.constant 0 : index
      %c0_22 = arith.constant 0 : index
      %57 = vector.load %arg4[%c0_21, %c0_22] : memref<1x128xf32, #tpu.memory_space<vmem>>, vector<1x128xf32>
      tpu.vector_store %arg4[%c0_21, %c0_22], %56 {strides = array<i32>} : memref<1x128xf32, #tpu.memory_space<vmem>>, vector<1x128xf32>,
    } else {
    }
    return
  }
  func.func @transform_0(%arg0: i32, %arg1: i32) -> (i32, i32) {
    %c1_i32 = arith.constant 1 : i32
    %0 = arith.muli %arg0, %c1_i32 : i32
    %1 = arith.addi %0, %arg1 : i32
    %c0_i32 = arith.constant 0 : i32
    %2 = arith.minsi %1, %c0_i32 : i32
    %c0_i32_0 = arith.constant 0 : i32
    %c0_i32_1 = arith.constant 0 : i32
    return %2, %c0_i32_0 : i32, i32
  }
  func.func @transform_1(%arg0: i32, %arg1: i32) -> (i32, i32) {
    %c1_i32 = arith.constant 1 : i32
    %0 = arith.muli %arg0, %c1_i32 : i32
    %1 = arith.addi %0, %arg1 : i32
    %c0_i32 = arith.constant 0 : i32
    %2 = arith.minsi %1, %c0_i32 : i32
    %c0_i32_0 = arith.constant 0 : i32
    %c0_i32_1 = arith.constant 0 : i32
    return %2, %c0_i32_0 : i32, i32
  }
  func.func @transform_2(%arg0: i32, %arg1: i32) -> (i32, i32) {
    %c0_i32 = arith.constant 0 : i32
    %c0_i32_0 = arith.constant 0 : i32
    return %c0_i32, %arg0 : i32, i32
  }
}

</mosaic_0001>

<llo_original>
// kernel: tpu_custom_call.1
$region0: #{tpu_custom_call.1}
  #allocation0 [shape = 'u32[]', space=smem, size = 0x4, offset = 0x4, fixed_abs, tag = 'smem constant byte address 0x4 - core index']
  #allocation1 [shape = 'u32[144,128]{1,0:T(1,128)}', space=vmem, size = 0x12000, scoped, tag = 'internal scratch']
  #allocation2 [shape = 'f32[1,32]{1,0:T(1,128)}', space=vmem, size = 0x200, scoped, tag = 'scratch operand']
  %s0 = inlined_call_operand.vmem [shape: f32[16,32], index: 0, kind: input, shape index: {}]
  %s1 = inlined_call_operand.vmem [shape: s32[16,1], index: 1, kind: input, shape index: {}]
  %s2 = inlined_call_operand.hbm [shape: f32[1,128], index: 2, kind: output, shape index: {}]
  %s3 = sld [smem:[#allocation0]]
  $region26: #{tpu_custom_call.1} parent=0
    _
  %s5 = ssub.s32 1, %s3
  %s6 = scalar_select 0, %s5, %s3
  $region1: #{tpu_custom_call.1} parent=0
    #allocation3 [shape = 'u8[512]{0}', space=vmem, size = 0x400, scoped, tag = 'output window, operand 0, single buffered']
    #allocation4 [shape = 's32[1]{0}', space=sflag, size = 0x4, scoped, tag = 'scoped memory for tpu_custom_call.1']
    %7 = vsyncpa [#allocation4], 0
    // Predicated region
    $region2: #{tpu_custom_call.1} parent=1 // pred_check
      _
    $region3: #{tpu_custom_call.1} parent=1 // pred_check_branch
      %9 = sbr.rel (0) target = $region5
    $region4: #{tpu_custom_call.1} parent=1 // pred_region
      %s10 = sadd.s32 0, 0
      %p11 = scmp.lt.s32.totalorder %s10, 0
      %s12 = scalar_select %p11, %s10, 0
      %s13 = smul.u32 2, %s12
      %p14 = scmp.lt.s32.totalorder %s13, 1
      %s15 = scalar_select %p14, %s13, 1
      %s16 = smul.addr %s15, 8
      %s17 = scalar_lea.vmem %s0, %s16
      %s18 = sadd.s32 0, 0
      %p19 = scmp.lt.s32.totalorder %s18, 0
      %s20 = scalar_select %p19, %s18, 0
      %s21 = smul.u32 2, %s20
    $region5: #{tpu_custom_call.1} parent=1 // pred_fallthru
      _
    // Predicated region
    $region6: #{tpu_custom_call.1} parent=1 // pred_check
      _
    $region7: #{tpu_custom_call.1} parent=1 // pred_check_branch
      %23 = sbr.rel (0) target = $region9
    $region8: #{tpu_custom_call.1} parent=1 // pred_region
      %s24 = sadd.s32 0, 0
      %p25 = scmp.lt.s32.totalorder %s24, 0
      %s26 = scalar_select %p25, %s24, 0
      %s27 = smul.u32 2, %s26
      %p28 = scmp.lt.s32.totalorder %s27, 1
      %s29 = scalar_select %p28, %s27, 1
      %s30 = smul.addr %s29, 8
      %s31 = scalar_lea.vmem %s1, %s30
      %s32 = sadd.s32 0, 0
      %p33 = scmp.lt.s32.totalorder %s32, 0
      %s34 = scalar_select %p33, %s32, 0
      %s35 = smul.u32 2, %s34
    $region9: #{tpu_custom_call.1} parent=1 // pred_fallthru
      _
    %s36 = sadd.s32 0, 0
    %p37 = scmp.lt.s32.totalorder %s36, 0
    %s38 = scalar_select %p37, %s36, 0
    %s39 = smul.u32 2, %s38
    %p40 = scmp.lt.s32.totalorder %s39, 1
    %s41 = scalar_select %p40, %s39, 1
    %s42 = smul.addr %s41, 8
    %s43 = scalar_lea.vmem %s0, %s42
    %s44 = sadd.s32 0, 0
    %p45 = scmp.lt.s32.totalorder %s44, 0
    %s46 = scalar_select %p45, %s44, 0
    %s47 = smul.u32 2, %s46
    %p48 = scmp.lt.s32.totalorder %s47, 1
    %s49 = scalar_select %p48, %s47, 1
    %s50 = smul.addr %s49, 8
    %s51 = scalar_lea.vmem %s1, %s50
    %s52 = sadd.s32 0, 0
    %p53 = scmp.lt.s32.totalorder %s52, 0
    %s54 = scalar_select %p53, %s52, 0
    %s55 = smul.u32 2, %s54
    %p56 = scmp.lt.s32.totalorder %s55, 1
    %s57 = scalar_select %p56, %s55, 1
    %s58 = smul.addr %s57, 8
    %s59 = scalar_lea.vmem %s0, %s58
    %s60 = sadd.s32 0, 0
    %p61 = scmp.lt.s32.totalorder %s60, 0
    %s62 = scalar_select %p61, %s60, 0
    %s63 = smul.u32 2, %s62
    %s64 = sadd.s32 0, 0
    %p65 = scmp.lt.s32.totalorder %s64, 0
    %s66 = scalar_select %p65, %s64, 0
    %s67 = smul.u32 2, %s66
    %p68 = scmp.lt.s32.totalorder %s67, 1
    %s69 = scalar_select %p68, %s67, 1
    %s70 = smul.addr %s69, 8
    %s71 = scalar_lea.vmem %s1, %s70
    %s72 = sadd.s32 0, 0
    %p73 = scmp.lt.s32.totalorder %s72, 0
    %s74 = scalar_select %p73, %s72, 0
    %s75 = smul.u32 2, %s74
    %p76 = scmp.eq.s32.totalorder 0, 0
    // Predicated region
    $region10: #{tpu_custom_call.1} parent=1 // pred_check
      %p77 = pneg %p76
    $region11: #{tpu_custom_call.1} parent=1 // pred_check_branch
      %79 = sbr.rel (%p77) target = $region13
    $region12: #{tpu_custom_call.1} parent=1 // pred_region
      %vm80 = vcmask 253952
      %81 = vst.msk [vmem:[#allocation2] sm:$0x1] %vm80, 0.0
    $region13: #{tpu_custom_call.1} parent=1 // pred_fallthru
      _
    %s82 = sadd.s32 0, 0
    %s83 = smul.u32 %s82, 16
    %v84 = vlaneseq
    %v85 = vshrl.u32 %v84, 7
    %v86 = vadd.s32 %v85, 8
    %v87 = vstv %s83
    %v88 = vadd.s32 %v87, %v85
    %v89 = vadd.s32 %v87, %v86
    %vm90 = vcmp.lt.s32.totalorder %v88, 16
    %vm91 = vcmp.lt.s32.totalorder %v89, 16
    %v92 = vld [vmem:[%s59] sm:$0xff]
    %v93 = vld [vmem:[%s59 + $0x8] sm:$0xff]
    %v94 = vsel %vm90, 1, 0
    %v95 = vsel %vm91, 1, 0
    %vm96 = vcmp.eq.s32.totalorder %v94, 1
    %vm97 = vcmp.eq.s32.totalorder %v95, 1
    %v98 = vsel %vm96, %v92, 0.0
    %v99 = vsel %vm97, %v93, 0.0
    %vm100 = vcmask 261120
    %v101 = vsel %vm100, %v98, -inf
    %102 = vmax.xlane.f32.xlu0 %v101
    %v103 = vpop.xlane.xlu0 %102
    %v104 = vsel %vm100, %v99, -inf
    %105 = vmax.xlane.f32.xlu0 %v104
    %v106 = vpop.xlane.xlu0 %105
    %v107 = vsub.f32 %v98, %v103
    %v108 = vsub.f32 %v99, %v106
    %v109 = vmul.f32 %v107, 1.442695
    %v110 = vpow.pop %v109
    %v111 = vmul.f32 %v108, 1.442695
    %v112 = vpow.pop %v111
    %v113 = vsel %vm100, %v110, 0.0
    %114 = vadd.xlane.f32.xlu0 %v113
    %v115 = vpop.xlane.xlu0 %114
    %v116 = vsel %vm100, %v112, 0.0
    %117 = vadd.xlane.f32.xlu0 %v116
    %v118 = vpop.xlane.xlu0 %117
    %v119 = vlog2.pop %v115
    %v120 = vmul.f32 %v119, 0.6931472
    %v121 = vlog2.pop %v118
    %v122 = vmul.f32 %v121, 0.6931472
    %v123 = vsub.f32 %v107, %v120
    %v124 = vsub.f32 %v108, %v122
    %v125 = vld [vmem:[%s71] sm:$0xff]
    %v126 = vld [vmem:[%s71 + $0x8] sm:$0xff]
    %v127 = vlaneseq
    %v128 = vand.u32 %v127, 127
    %129 = vset.pattern.permute.xlu0 0
    %130 = vperm.xlu0 %129, %v125
    %v131 = vpop.permute.xlu0 %130
    %132 = vset.pattern.permute.xlu0 0
    %133 = vperm.xlu0 %132, %v126
    %v134 = vpop.permute.xlu0 %133
    %vm135 = vcmp.eq.s32.totalorder %v128, %v131
    %vm136 = vcmp.eq.s32.totalorder %v128, %v134
    %v137 = vsel %vm135, 1, 0
    %v138 = vsel %vm136, 1, 0
    %v139 = vcvt.s32.f32 %v137
    %v140 = vcvt.s32.f32 %v138
    %v141 = vmul.f32 %v139, 0.9
    %v142 = vmul.f32 %v140, 0.9
    %v143 = vadd.f32 %v141, 0.003125
    %v144 = vadd.f32 %v142, 0.003125
    %v145 = vsub.f32 0.0, %v143
    %v146 = vsub.f32 0.0, %v144
    %v147 = vmul.f32 %v145, %v123
    %v148 = vmul.f32 %v146, %v124
    %v149 = vsel %vm96, %v147, 0.0
    %v150 = vsel %vm97, %v148, 0.0
    %v151 = vld [vmem:[#allocation2] sm:$0x1]
    %v152 = vsel %vm100, %v149, 0.0
    %v153 = vsel %vm100, %v150, 0.0
    %v154 = vadd.f32 %v152, %v153
    %v155 = vrot.slane %v154, 4
    %v156 = vadd.f32 %v154, %v155
    %v157 = vrot.slane %v156, 2
    %v158 = vadd.f32 %v156, %v157
    %v159 = vrot.slane %v158, 1
    %v160 = vadd.f32 %v158, %v159
    %v161 = vadd.f32 %v151, %v160
    %vm162 = vcmask 253952
    %163 = vst.msk [vmem:[#allocation2] sm:$0x1] %vm162, %v161
    // Predicated region
    $region14: #{tpu_custom_call.1} parent=1 // pred_check
      %p164 = pneg %p76
    $region15: #{tpu_custom_call.1} parent=1 // pred_check_branch
      %166 = sbr.rel (%p164) target = $region17
    $region16: #{tpu_custom_call.1} parent=1 // pred_region
      %v167 = vld [vmem:[#allocation2] sm:$0x1]
      %v168 = vsel %vm162, %v167, 0.0
      %169 = vadd.xlane.f32.xlu0 %v168
      %v170 = vpop.xlane.xlu0 %169
      %v171 = vrot.slane %v170, 4
      %v172 = vadd.f32 %v170, %v171
      %v173 = vrot.slane %v172, 2
      %v174 = vadd.f32 %v172, %v173
      %v175 = vrot.slane %v174, 1
      %v176 = vadd.f32 %v174, %v175
      %s177 = vtos %v176
      %v178 = vstv %s177
      %179 = vst [vmem:[#allocation3] sm:$0x1] %v178
    $region17: #{tpu_custom_call.1} parent=1 // pred_fallthru
      _
    // Predicated region
    $region18: #{tpu_custom_call.1} parent=1 // pred_check
      _
    $region19: #{tpu_custom_call.1} parent=1 // pred_check_branch
      %181 = sbr.rel (0) target = $region21
    $region20: #{tpu_custom_call.1} parent=1 // pred_region
      %s183 = ssub.s32 16, 16
      %184 = vsyncadd [#allocation4], %s183
      %s186 = sshll.u32 [#allocation3], 4
      %s187 = int_to_ptr.vmem [resolvable:$true] %s186
      %189 = dma.vmem_to_hbm [thread:$0]  %s187, 16, %s2, [#allocation4]
    $region21: #{tpu_custom_call.1} parent=1 // pred_fallthru
      _
    // Predicated region
    $region22: #{tpu_custom_call.1} parent=1 // pred_check
      _
    $region23: #{tpu_custom_call.1} parent=1 // pred_check_branch
      %191 = sbr.rel (0) target = $region25
    $region24: #{tpu_custom_call.1} parent=1 // pred_region
      %192 = dma.done [#allocation4], 16
    $region25: #{tpu_custom_call.1} parent=1 // pred_fallthru
      _
    %193 = vsyncpa [#allocation4], 1

</llo_original>
